<compile_context>
chip_gen: v5e
topology: v5e:2x2
jax: 0.10.0
libtpu: 0.0.40
codegen_flags: <defaults>
</compile_context>

<pallas_src>
import jax
import jax.numpy as jnp
from jax.experimental import pallas as pl
from jax.experimental.pallas import tpu as pltpu


def _leaky_relu(x, negative_slope=0.01):
    # PyTorch nn.LeakyReLU default negative_slope = 0.01
    return jnp.where(x > 0, x, negative_slope * x)


def _round_up(x, m):
    return ((x + m - 1) // m) * m


# ---------------------------------------------------------------------------
# Pallas kernel: fused 3-layer MLP over one batch tile
#   inputs per tile: x [tb, 2E] bf16 (src||tgt embeddings), feat [tb, 1] f32
#   output per tile: [tb, 1] f32
# ---------------------------------------------------------------------------
def _mlp_kernel(x_ref, feat_ref,
                w1x_ref, w1f_ref, b1_ref,
                w2_ref, b2_ref, w3_ref, b3_ref,
                o_ref):
    # Layer 1 (split-K):  concat([src, tgt]) @ W1[:2E]  +  feat * W1[2E]  +  b1
    h1 = jnp.dot(x_ref[...], w1x_ref[...], preferred_element_type=jnp.float32)
    h1 = h1 + feat_ref[...] * w1f_ref[...] + b1_ref[...]   # [tb,1]*[1,E] VPU f32
    h1 = _leaky_relu(h1)                                    # [tb, E] f32

    # Layer 2
    h2 = jnp.dot(h1.astype(w2_ref.dtype), w2_ref[...],
                 preferred_element_type=jnp.float32)
    h2 = h2 + b2_ref[...]
    h2 = _leaky_relu(h2)                                    # [tb, E2] f32

    # Layer 3 (out_features == 1): MXU dot -> [tb, 1]; no sublane->lane relayout.
    out = jnp.dot(h2.astype(w3_ref.dtype), w3_ref[...],
                  preferred_element_type=jnp.float32)
    o_ref[...] = out + b3_ref[...]                          # [tb, 1] f32


# ---------------------------------------------------------------------------
# One-time (load-time) weight preprocessing — hoisted out of the forward path.
# ---------------------------------------------------------------------------
def prepare_params(params, embedding_dim, act_dtype=jnp.bfloat16):
    w1, b1, w2, b2, w3, b3 = params
    E = embedding_dim
    return (
        w1[:2 * E].astype(act_dtype),     # [2E, E] combined src/tgt half of layer 1 (MXU)
        w1[2 * E:2 * E + 1],              # [1, E]  scalar-feature row of layer 1 (VPU, f32)
        b1,                               # [1, E]
        w2.astype(act_dtype),             # [E, E2]
        b2,                               # [1, E2]
        w3.astype(act_dtype),             # [E2, 1]
        b3,                               # [1, 1]
    )


def _vmem_limit_bytes(tile_b, E, E2):
    per_row = 2 * (2 * E * 2)      # bf16 activation stream, double-buffered
    per_row += 2 * 128 * 4         # feat block (lane-padded to 128), double-buffered
    per_row += 2 * 128 * 4         # output block (lane-padded to 128), double-buffered
    per_row += (E + E2) * 4        # f32 intermediates h1/h2
    est = tile_b * per_row + (4 << 20)   # + weights + headroom
    return int(min(48 << 20, max(8 << 20, 2 * est)))


def mlp_pallas(x2e, feat, prepped_params, *, tile_b=4096):
    """x2e: [B, 2E] bf16 (src||tgt embeddings), feat: [B, 1] f32. Returns [B] f32."""
    w1x, w1f, b1, w2, b2, w3, b3 = prepped_params
    B, twoE = x2e.shape
    E = twoE // 2
    E2 = w2.shape[1]

    # Tile selection: big tiles (multiple of 8) without padding; keep >=2 tiles for
    # large batches so both v7x TensorCores are used. Tail blocks rely on standard
    # Pallas TPU boundary handling (OOB reads padded, OOB writes masked).
    tile_b = max(8, min(tile_b, _round_up(B, 8)))
    if B >= 1024 and pl.cdiv(B, tile_b) < 2:
        tile_b = _round_up(pl.cdiv(B, 2), 256)
    n_tiles = pl.cdiv(B, tile_b)

    out = pl.pallas_call(
        _mlp_kernel,
        out_shape=jax.ShapeDtypeStruct((B, 1), jnp.float32),
        grid_spec=pltpu.PrefetchScalarGridSpec(
            num_scalar_prefetch=0,
            grid=(n_tiles,),
            in_specs=[
                pl.BlockSpec((tile_b, twoE), lambda i: (i, 0)),  # src||tgt tile (bf16)
                pl.BlockSpec((tile_b, 1), lambda i: (i, 0)),     # scalar feature (f32)
                # weights / biases: grid-invariant blocks (same index every step)
                pl.BlockSpec((twoE, E), lambda i: (0, 0)),       # w1 (src||tgt halves)
                pl.BlockSpec((1, E), lambda i: (0, 0)),          # w1 (feature row)
                pl.BlockSpec((1, E), lambda i: (0, 0)),          # b1
                pl.BlockSpec((E, E2), lambda i: (0, 0)),         # w2
                pl.BlockSpec((1, E2), lambda i: (0, 0)),         # b2
                pl.BlockSpec((E2, 1), lambda i: (0, 0)),         # w3 (column)
                pl.BlockSpec((1, 1), lambda i: (0, 0)),          # b3
            ],
            out_specs=pl.BlockSpec((tile_b, 1), lambda i: (i, 0)),
        ),
        compiler_params=pltpu.CompilerParams(
            dimension_semantics=("parallel",),
            vmem_limit_bytes=_vmem_limit_bytes(tile_b, E, E2),
        ),
    )(x2e, feat, w1x, w1f, b1, w2, b2, w3, b3)

    return out[:, 0]


# ---------------------------------------------------------------------------
# PredictionLayer forward (gather glue in plain JAX, MLP fused in Pallas)
# ---------------------------------------------------------------------------
def prediction_layer_forward(batch_data, embeddings, prepped_params, *,
                             slice_val, tile_b=4096):
    """
    batch_data: [B, 5] f32 (cols: 0=src node, 1=tgt node, 2=time, 3=unused, 4=scalar feat)
    embeddings: [T, n_nodes, E] — pass a bf16 table (cast once at load time).
    """
    B = batch_data.shape[0]
    E = embeddings.shape[-1]

    # NOTE: matches the PyTorch float-// semantics; t_idx can be negative if time < slice
    # (out-of-range indices are clamped by the XLA gather on TPU rather than raising).
    t_idx = (batch_data[:, 2] // slice_val - 1).astype(jnp.int32)      # [B]
    node_idx = batch_data[:, :2].astype(jnp.int32)                     # [B, 2] (src, tgt)

    # Single gather for both streams: [B, 2, E] -> contiguous [B, 2E] (src feats || tgt feats)
    pair = embeddings[t_idx[:, None], node_idx]                        # [B, 2, E] (bf16 table)
    x2e = pair.reshape(B, 2 * E).astype(jnp.bfloat16)                  # no-op if already bf16
    feat = batch_data[:, 4:5].astype(jnp.float32)                      # [B, 1]

    return mlp_pallas(x2e, feat, prepped_params, tile_b=tile_b)        # [B]


# ---------------------------------------------------------------------------
# Deterministic parameter init (shapes from PredictionLayer.__init__)
# Weights are stored [in_features, out_features] (x @ W + b).
# ---------------------------------------------------------------------------
def init_params(key, embedding_dim):
    in_dim = embedding_dim * 2 + 1
    hid1 = embedding_dim
    hid2 = embedding_dim // 2
    k = jax.random.split(key, 6)
    scale = 0.1
    w1 = scale * jax.random.normal(k[0], (in_dim, hid1), jnp.float32)
    b1 = scale * jax.random.normal(k[1], (1, hid1), jnp.float32)
    w2 = scale * jax.random.normal(k[2], (hid1, hid2), jnp.float32)
    b2 = scale * jax.random.normal(k[3], (1, hid2), jnp.float32)
    w3 = scale * jax.random.normal(k[4], (hid2, 1), jnp.float32)
    b3 = scale * jax.random.normal(k[5], (1, 1), jnp.float32)
    return (w1, b1, w2, b2, w3, b3)


if __name__ == "__main__":
    key = jax.random.PRNGKey(0)
    k_emb, k_param, k_nodes, k_time, k_feat = jax.random.split(key, 5)

    # Small synthetic configuration
    embedding_dim = 32
    n_nodes = 20
    n_time_slices = 4
    slice_val = 10.0
    B = 16

    embeddings_f32 = jax.random.normal(
        k_emb, (n_time_slices, n_nodes, embedding_dim), jnp.float32
    )
    # Load-time casts/preprocessing (done once, outside the forward path).
    embeddings_bf16 = embeddings_f32.astype(jnp.bfloat16)
    params = init_params(k_param, embedding_dim)
    prepped = prepare_params(params, embedding_dim)

    # batch_data columns: [src_node, tgt_node, time, unused, scalar_feature]
    src = jax.random.randint(k_nodes, (B,), 0, n_nodes).astype(jnp.float32)
    tgt = jax.random.randint(jax.random.fold_in(k_nodes, 1), (B,), 0, n_nodes).astype(jnp.float32)
    # time chosen so that time // slice - 1 lands in [0, n_time_slices)
    times = jax.random.randint(
        k_time, (B,), int(slice_val), int(slice_val * (n_time_slices + 1))
    ).astype(jnp.float32)
    unused = jnp.zeros((B,), jnp.float32)
    feat = jax.random.uniform(k_feat, (B,), jnp.float32)
    batch_data = jnp.stack([src, tgt, times, unused, feat], axis=1)   # [B, 5]

    forward = jax.jit(prediction_layer_forward, static_argnames=("slice_val", "tile_b"))
    out = forward(batch_data, embeddings_bf16, prepped, slice_val=slice_val, tile_b=4096)
    out = jax.block_until_ready(out)
    assert out.shape == (B,)

    # ------------------------------------------------------------------
    # References
    # ------------------------------------------------------------------
    w1, b1, w2, b2, w3, b3 = params
    E = embedding_dim
    t_idx = (batch_data[:, 2] // slice_val - 1).astype(jnp.int32)
    s_e = embeddings_f32[t_idx, batch_data[:, 0].astype(jnp.int32)]
    t_e = embeddings_f32[t_idx, batch_data[:, 1].astype(jnp.int32)]
    fcol = batch_data[:, 4:5]

    # (a) bf16-matched reference (same casts/accumulation as the kernel) — tight check
    bf = jnp.bfloat16
    x2e_ref = jnp.concatenate([s_e, t_e], axis=1).astype(bf)
    h1r = (jnp.dot(x2e_ref, w1[:2 * E].astype(bf), preferred_element_type=jnp.float32)
           + fcol * w1[2 * E:2 * E + 1] + b1)
    h1r = jnp.where(h1r > 0, h1r, 0.01 * h1r)
    h2r = jnp.dot(h1r.astype(bf), w2.astype(bf), preferred_element_type=jnp.float32) + b2
    h2r = jnp.where(h2r > 0, h2r, 0.01 * h2r)
    ref_bf16 = jnp.dot(h2r.astype(bf), w3.astype(bf),
                       preferred_element_type=jnp.float32)[:, 0] + b3[0, 0]
    assert jnp.allclose(out, ref_bf16, atol=5e-3, rtol=5e-3)

    # (b) full-f32 PyTorch-equivalent reference — loose check (bf16 table + matmuls)
    x = jnp.concatenate([s_e, t_e, fcol], axis=1)
    h = x @ w1 + b1
    h = jnp.where(h > 0, h, 0.01 * h)
    h = h @ w2 + b2
    h = jnp.where(h > 0, h, 0.01 * h)
    ref_f32 = jnp.squeeze(h @ w3 + b3)
    assert jnp.allclose(out, ref_f32, atol=3e-2, rtol=3e-2)

    print("KERNEL_OK")
</pallas_src>

<mosaic_0001>
module attributes {stable_mosaic.version = 11 : i64} {
  func.func @_mlp_kernel(%arg0: i32, %arg1: memref<16x64xbf16, #tpu.memory_space<vmem>>, %arg2: memref<16x1xf32, #tpu.memory_space<vmem>>, %arg3: memref<64x32xbf16, #tpu.memory_space<vmem>>, %arg4: memref<1x32xf32, #tpu.memory_space<vmem>>, %arg5: memref<1x32xf32, #tpu.memory_space<vmem>>, %arg6: memref<32x16xbf16, #tpu.memory_space<vmem>>, %arg7: memref<1x16xf32, #tpu.memory_space<vmem>>, %arg8: memref<16x1xbf16, #tpu.memory_space<vmem>>, %arg9: memref<1x1xf32, #tpu.memory_space<vmem>>, %arg10: memref<16x1xf32, #tpu.memory_space<vmem>>) attributes {dimension_semantics = [#tpu.dimension_semantics<parallel>], iteration_bounds = array<i64: 1>, scalar_prefetch = 0 : i64, scratch_operands = 0 : i64, tpu.core_type = #tpu.core_type<tc>, window_params = [{transform_indices = @transform_0, window_bounds = array<i64: 16, 64>}, {transform_indices = @transform_1, window_bounds = array<i64: 16, 1>}, {pipeline_mode = #tpu.pipeline_mode<synchronous>, transform_indices = @transform_2, window_bounds = array<i64: 64, 32>}, {pipeline_mode = #tpu.pipeline_mode<synchronous>, transform_indices = @transform_3, window_bounds = array<i64: 1, 32>}, {pipeline_mode = #tpu.pipeline_mode<synchronous>, transform_indices = @transform_4, window_bounds = array<i64: 1, 32>}, {pipeline_mode = #tpu.pipeline_mode<synchronous>, transform_indices = @transform_5, window_bounds = array<i64: 32, 16>}, {pipeline_mode = #tpu.pipeline_mode<synchronous>, transform_indices = @transform_6, window_bounds = array<i64: 1, 16>}, {pipeline_mode = #tpu.pipeline_mode<synchronous>, transform_indices = @transform_7, window_bounds = array<i64: 16, 1>}, {pipeline_mode = #tpu.pipeline_mode<synchronous>, transform_indices = @transform_8, window_bounds = array<i64: 1, 1>}, {transform_indices = @transform_9, window_bounds = array<i64: 16, 1>}]} {
    %c0 = arith.constant 0 : index
    %c0_0 = arith.constant 0 : index
    %0 = vector.load %arg1[%c0, %c0_0] : memref<16x64xbf16, #tpu.memory_space<vmem>>, vector<16x64xbf16>
    %c0_1 = arith.constant 0 : index
    %c0_2 = arith.constant 0 : index
    %1 = vector.load %arg3[%c0_1, %c0_2] : memref<64x32xbf16, #tpu.memory_space<vmem>>, vector<64x32xbf16>
    %cst = arith.constant dense<0.000000e+00> : vector<16x32xf32>
    %2 = tpu.matmul %0, %1, %cst {dimension_numbers = #tpu.dot_dimension_numbers<[1], [0], [0], [1], [0, 0, 1, 1], [], []>} : vector<16x64xbf16>, vector<64x32xbf16>, vector<16x32xf32> -> vector<16x32xf32>
    %c0_3 = arith.constant 0 : index
    %c0_4 = arith.constant 0 : index
    %3 = vector.load %arg2[%c0_3, %c0_4] : memref<16x1xf32, #tpu.memory_space<vmem>>, vector<16x1xf32>
    %c0_5 = arith.constant 0 : index
    %c0_6 = arith.constant 0 : index
    %4 = vector.load %arg4[%c0_5, %c0_6] : memref<1x32xf32, #tpu.memory_space<vmem>>, vector<1x32xf32>
    %5 = vector.broadcast %3 : vector<16x1xf32> to vector<16x32xf32>
    %6 = vector.broadcast %4 : vector<1x32xf32> to vector<16x32xf32>
    %7 = arith.mulf %5, %6 : vector<16x32xf32>
    %8 = arith.addf %2, %7 : vector<16x32xf32>
    %c0_7 = arith.constant 0 : index
    %c0_8 = arith.constant 0 : index
    %9 = vector.load %arg5[%c0_7, %c0_8] : memref<1x32xf32, #tpu.memory_space<vmem>>, vector<1x32xf32>
    %10 = vector.broadcast %9 : vector<1x32xf32> to vector<16x32xf32>
    %11 = arith.addf %8, %10 : vector<16x32xf32>
    %cst_9 = arith.constant 0.000000e+00 : f32
    %12 = vector.broadcast %cst_9 : f32 to vector<16x32xf32>
    %13 = arith.cmpf ogt, %11, %12 : vector<16x32xf32>
    %cst_10 = arith.constant 0.00999999977 : f32
    %14 = vector.broadcast %cst_10 : f32 to vector<16x32xf32>
    %15 = arith.mulf %14, %11 : vector<16x32xf32>
    %16 = arith.select %13, %11, %15 : vector<16x32xi1>, vector<16x32xf32>
    %17 = arith.truncf %16 : vector<16x32xf32> to vector<16x32xbf16>
    %c0_11 = arith.constant 0 : index
    %c0_12 = arith.constant 0 : index
    %18 = vector.load %arg6[%c0_11, %c0_12] : memref<32x16xbf16, #tpu.memory_space<vmem>>, vector<32x16xbf16>
    %cst_13 = arith.constant dense<0.000000e+00> : vector<16x16xf32>
    %19 = tpu.matmul %17, %18, %cst_13 {dimension_numbers = #tpu.dot_dimension_numbers<[1], [0], [0], [1], [0, 0, 1, 1], [], []>} : vector<16x32xbf16>, vector<32x16xbf16>, vector<16x16xf32> -> vector<16x16xf32>
    %c0_14 = arith.constant 0 : index
    %c0_15 = arith.constant 0 : index
    %20 = vector.load %arg7[%c0_14, %c0_15] : memref<1x16xf32, #tpu.memory_space<vmem>>, vector<1x16xf32>
    %21 = vector.broadcast %20 : vector<1x16xf32> to vector<16x16xf32>
    %22 = arith.addf %19, %21 : vector<16x16xf32>
    %cst_16 = arith.constant 0.000000e+00 : f32
    %23 = vector.broadcast %cst_16 : f32 to vector<16x16xf32>
    %24 = arith.cmpf ogt, %22, %23 : vector<16x16xf32>
    %cst_17 = arith.constant 0.00999999977 : f32
    %25 = vector.broadcast %cst_17 : f32 to vector<16x16xf32>
    %26 = arith.mulf %25, %22 : vector<16x16xf32>
    %27 = arith.select %24, %22, %26 : vector<16x16xi1>, vector<16x16xf32>
    %28 = arith.truncf %27 : vector<16x16xf32> to vector<16x16xbf16>
    %c0_18 = arith.constant 0 : index
    %c0_19 = arith.constant 0 : index
    %29 = vector.load %arg8[%c0_18, %c0_19] : memref<16x1xbf16, #tpu.memory_space<vmem>>, vector<16x1xbf16>
    %cst_20 = arith.constant dense<0.000000e+00> : vector<16x1xf32>
    %30 = tpu.matmul %28, %29, %cst_20 {dimension_numbers = #tpu.dot_dimension_numbers<[1], [0], [0], [1], [0, 0, 1, 1], [], []>} : vector<16x16xbf16>, vector<16x1xbf16>, vector<16x1xf32> -> vector<16x1xf32>
    %c0_21 = arith.constant 0 : index
    %c0_22 = arith.constant 0 : index
    %31 = vector.load %arg9[%c0_21, %c0_22] : memref<1x1xf32, #tpu.memory_space<vmem>>, vector<1x1xf32>
    %32 = vector.broadcast %31 : vector<1x1xf32> to vector<16x1xf32>
    %33 = arith.addf %30, %32 : vector<16x1xf32>
    %c0_23 = arith.constant 0 : index
    %c0_24 = arith.constant 0 : index
    %34 = vector.load %arg10[%c0_23, %c0_24] : memref<16x1xf32, #tpu.memory_space<vmem>>, vector<16x1xf32>
    tpu.vector_store %arg10[%c0_23, %c0_24], %33 {strides = array<i32>} : memref<16x1xf32, #tpu.memory_space<vmem>>, vector<16x1xf32>,
    return
  }
  func.func @transform_0(%arg0: i32) -> (i32, i32) {
    %c0_i32 = arith.constant 0 : i32
    %c0_i32_0 = arith.constant 0 : i32
    return %arg0, %c0_i32 : i32, i32
  }
  func.func @transform_1(%arg0: i32) -> (i32, i32) {
    %c0_i32 = arith.constant 0 : i32
    %c0_i32_0 = arith.constant 0 : i32
    return %arg0, %c0_i32 : i32, i32
  }
  func.func @transform_2(%arg0: i32) -> (i32, i32) {
    %c0_i32 = arith.constant 0 : i32
    %c0_i32_0 = arith.constant 0 : i32
    %c0_i32_1 = arith.constant 0 : i32
    return %c0_i32, %c0_i32_0 : i32, i32
  }
  func.func @transform_3(%arg0: i32) -> (i32, i32) {
    %c0_i32 = arith.constant 0 : i32
    %c0_i32_0 = arith.constant 0 : i32
    %c0_i32_1 = arith.constant 0 : i32
    return %c0_i32, %c0_i32_0 : i32, i32
  }
  func.func @transform_4(%arg0: i32) -> (i32, i32) {
    %c0_i32 = arith.constant 0 : i32
    %c0_i32_0 = arith.constant 0 : i32
    %c0_i32_1 = arith.constant 0 : i32
    return %c0_i32, %c0_i32_0 : i32, i32
  }
  func.func @transform_5(%arg0: i32) -> (i32, i32) {
    %c0_i32 = arith.constant 0 : i32
    %c0_i32_0 = arith.constant 0 : i32
    %c0_i32_1 = arith.constant 0 : i32
    return %c0_i32, %c0_i32_0 : i32, i32
  }
  func.func @transform_6(%arg0: i32) -> (i32, i32) {
    %c0_i32 = arith.constant 0 : i32
    %c0_i32_0 = arith.constant 0 : i32
    %c0_i32_1 = arith.constant 0 : i32
    return %c0_i32, %c0_i32_0 : i32, i32
  }
  func.func @transform_7(%arg0: i32) -> (i32, i32) {
    %c0_i32 = arith.constant 0 : i32
    %c0_i32_0 = arith.constant 0 : i32
    %c0_i32_1 = arith.constant 0 : i32
    return %c0_i32, %c0_i32_0 : i32, i32
  }
  func.func @transform_8(%arg0: i32) -> (i32, i32) {
    %c0_i32 = arith.constant 0 : i32
    %c0_i32_0 = arith.constant 0 : i32
    %c0_i32_1 = arith.constant 0 : i32
    return %c0_i32, %c0_i32_0 : i32, i32
  }
  func.func @transform_9(%arg0: i32) -> (i32, i32) {
    %c0_i32 = arith.constant 0 : i32
    %c0_i32_0 = arith.constant 0 : i32
    return %arg0, %c0_i32 : i32, i32
  }
}

</mosaic_0001>

<llo_original>
// kernel: prediction_layer_forward.1
$region0: #{prediction_layer_forward.1}
  #allocation0 [shape = 'u32[]', space=smem, size = 0x4, offset = 0x4, fixed_abs, tag = 'smem constant byte address 0x4 - core index']
  #allocation1 [shape = 'u32[72,128]{1,0:T(1,128)}', space=vmem, size = 0x9000, scoped, tag = 'internal scratch']
  #allocation2 [shape = 'f32[1,1]{1,0:T(1,128)S(1)}', space=vmem, size = 0x200, scoped, tag = 'scoped memory for prediction_layer_forward.1']
  %s0 = inlined_call_operand.vmem [shape: bf16[16,64], index: 0, kind: input, shape index: {}]
  %s1 = inlined_call_operand.vmem [shape: f32[16,1], index: 1, kind: input, shape index: {}]
  %s2 = inlined_call_operand.vmem [shape: bf16[64,32], index: 2, kind: input, shape index: {}]
  %s3 = inlined_call_operand.vmem [shape: f32[1,32], index: 3, kind: input, shape index: {}]
  %s4 = inlined_call_operand.vmem [shape: f32[1,32], index: 4, kind: input, shape index: {}]
  %s5 = inlined_call_operand.vmem [shape: bf16[32,16], index: 5, kind: input, shape index: {}]
  %s6 = inlined_call_operand.vmem [shape: f32[1,16], index: 6, kind: input, shape index: {}]
  %s7 = inlined_call_operand.vmem [shape: bf16[16,1], index: 7, kind: input, shape index: {}]
  %s8 = inlined_call_operand.<no memory space> [shape: f32[1,1], index: 8, kind: input, shape index: {}]
  %s9 = inlined_call_operand.vmem [shape: f32[16,1], index: 9, kind: output, shape index: {}]
  %s10 = sld [smem:[#allocation0]]
  $region46: #{prediction_layer_forward.1} parent=0
    _
  %s12 = ssub.s32 1, %s10
  %s13 = scalar_select 0, %s12, %s10
  %v14 = vstv %s8
  %15 = vst [vmem:[#allocation2] sm:$0x1] %v14
  // Predicated region
  $region2: #{prediction_layer_forward.1} parent=0 // pred_check
    _
  $region3: #{prediction_layer_forward.1} parent=0 // pred_check_branch
    %17 = sbr.rel (0) target = $region5
  $region4: #{prediction_layer_forward.1} parent=0 // pred_region
    _
  $region5: #{prediction_layer_forward.1} parent=0 // pred_fallthru
    _
  // Predicated region
  $region6: #{prediction_layer_forward.1} parent=0 // pred_check
    _
  $region7: #{prediction_layer_forward.1} parent=0 // pred_check_branch
    %19 = sbr.rel (0) target = $region9
  $region8: #{prediction_layer_forward.1} parent=0 // pred_region
    _
  $region9: #{prediction_layer_forward.1} parent=0 // pred_fallthru
    _
  // Predicated region
  $region10: #{prediction_layer_forward.1} parent=0 // pred_check
    _
  $region11: #{prediction_layer_forward.1} parent=0 // pred_check_branch
    %21 = sbr.rel (0) target = $region13
  $region12: #{prediction_layer_forward.1} parent=0 // pred_region
    _
  $region13: #{prediction_layer_forward.1} parent=0 // pred_fallthru
    _
  // Predicated region
  $region14: #{prediction_layer_forward.1} parent=0 // pred_check
    _
  $region15: #{prediction_layer_forward.1} parent=0 // pred_check_branch
    %23 = sbr.rel (0) target = $region17
  $region16: #{prediction_layer_forward.1} parent=0 // pred_region
    _
  $region17: #{prediction_layer_forward.1} parent=0 // pred_fallthru
    _
  // Predicated region
  $region18: #{prediction_layer_forward.1} parent=0 // pred_check
    _
  $region19: #{prediction_layer_forward.1} parent=0 // pred_check_branch
    %25 = sbr.rel (0) target = $region21
  $region20: #{prediction_layer_forward.1} parent=0 // pred_region
    _
  $region21: #{prediction_layer_forward.1} parent=0 // pred_fallthru
    _
  // Predicated region
  $region22: #{prediction_layer_forward.1} parent=0 // pred_check
    _
  $region23: #{prediction_layer_forward.1} parent=0 // pred_check_branch
    %27 = sbr.rel (0) target = $region25
  $region24: #{prediction_layer_forward.1} parent=0 // pred_region
    _
  $region25: #{prediction_layer_forward.1} parent=0 // pred_fallthru
    _
  // Predicated region
  $region26: #{prediction_layer_forward.1} parent=0 // pred_check
    _
  $region27: #{prediction_layer_forward.1} parent=0 // pred_check_branch
    %29 = sbr.rel (0) target = $region29
  $region28: #{prediction_layer_forward.1} parent=0 // pred_region
    _
  $region29: #{prediction_layer_forward.1} parent=0 // pred_fallthru
    _
  // Predicated region
  $region30: #{prediction_layer_forward.1} parent=0 // pred_check
    _
  $region31: #{prediction_layer_forward.1} parent=0 // pred_check_branch
    %31 = sbr.rel (0) target = $region33
  $region32: #{prediction_layer_forward.1} parent=0 // pred_region
    _
  $region33: #{prediction_layer_forward.1} parent=0 // pred_fallthru
    _
  // Predicated region
  $region34: #{prediction_layer_forward.1} parent=0 // pred_check
    _
  $region35: #{prediction_layer_forward.1} parent=0 // pred_check_branch
    %33 = sbr.rel (0) target = $region37
  $region36: #{prediction_layer_forward.1} parent=0 // pred_region
    _
  $region37: #{prediction_layer_forward.1} parent=0 // pred_fallthru
    _
  %v35 = vld [vmem:[%s0] sm:$0xf]
  %v36 = vld [vmem:[%s0 + $0x4] sm:$0xf]
  %v37 = vld [vmem:[%s2] sm:$0xf]
  %v38 = vld [vmem:[%s2 + $0x4] sm:$0xf]
  %v39 = vld [vmem:[%s2 + $0x8] sm:$0xf]
  %v40 = vld [vmem:[%s2 + $0xc] sm:$0xf]
  %v41 = vld [vmem:[%s2 + $0x10] sm:$0xf]
  %v42 = vld [vmem:[%s2 + $0x14] sm:$0xf]
  %v43 = vld [vmem:[%s2 + $0x18] sm:$0xf]
  %v44 = vld [vmem:[%s2 + $0x1c] sm:$0xf]
  %v45 = vld [vmem:[%s1] sm:$0xff]
  %v46 = vld [vmem:[%s1 + $0x8] sm:$0xff]
  %v47 = vld [vmem:[%s3] sm:$0x1]
  %49 = vset.pattern.permute.xlu0 0
  %50 = vperm.xlu0 %49, %v45
  %v51 = vpop.permute.xlu0 %50
  %54 = vset.pattern.permute.xlu0 0
  %55 = vperm.xlu0 %54, %v46
  %v56 = vpop.permute.xlu0 %55
  %v59 = vperm.slane %v47, 0
  %v61 = vmul.f32 %v51, %v59
  %v62 = vmul.f32 %v56, %v59
  %v65 = vunpack.c.l.b16 %v35
  %v66 = vunpack.c.l.b16 %v36
  %v67 = vpack.c.b16 %v66, %v65
  %v76 = vunpack.c.l.b16 %v37
  %v77 = vunpack.c.l.b16 %v38
  %v78 = vunpack.c.l.b16 %v39
  %v79 = vunpack.c.l.b16 %v40
  %v80 = vunpack.c.l.b16 %v41
  %v81 = vunpack.c.l.b16 %v42
  %v82 = vunpack.c.l.b16 %v43
  %v83 = vunpack.c.l.b16 %v44
  %v84 = vpack.c.b16 %v77, %v76
  %v85 = vpack.c.b16 %v79, %v78
  %v86 = vpack.c.b16 %v81, %v80
  %v87 = vpack.c.b16 %v83, %v82
  %vm92 = vcmask 523264
  %v94 = vsel %vm92, %v67, 0
  %96 = vmatpush.bf16.msra.mxu0 0
  %97 = vmatpush.bf16.msra.mxu0 0
  %98 = vmatpush.bf16.msra.mxu0 0
  %99 = vmatpush.bf16.msra.mxu0 0
  %100 = vmatpush.bf16.msra.mxu0 %v87
  %101 = vmatpush.bf16.msra.mxu0 %v86
  %102 = vmatpush.bf16.msra.mxu0 %v85
  %103 = vmatpush.bf16.msra.mxu0 %v84
  %104 = vmatmul.bf16.gmra.mxu0 %v94
  %v105 = vpop.f32.mrf.mxu0
  %v106 = vadd.f32 %v61, %v105
  %v107 = vpop.f32.mrf.mxu0
  %v108 = vadd.f32 %v62, %v107
  %109 = vdwg.mxu0
  %v110 = vld [vmem:[%s4] sm:$0x1]
  %v112 = vperm.slane %v110, 0
  %v114 = vadd.f32 %v106, %v112
  %v115 = vadd.f32 %v108, %v112
  %vm116 = vcmp.gt.f32.partialorder %v114, 0.0
  %vm117 = vcmp.gt.f32.partialorder %v115, 0.0
  %v118 = vmul.f32 %v114, 0.01
  %v119 = vmul.f32 %v115, 0.01
  %v120 = vsel %vm116, %v114, %v118
  %v121 = vsel %vm117, %v115, %v119
  %v122 = vpack.c.bf16 %v121, %v120
  %v123 = vld [vmem:[%s5] sm:$0xf]
  %v124 = vld [vmem:[%s5 + $0x4] sm:$0xf]
  %v125 = vld [vmem:[%s5 + $0x8] sm:$0xf]
  %v126 = vld [vmem:[%s5 + $0xc] sm:$0xf]
  %v127 = vld [vmem:[%s6] sm:$0x1]
  %v129 = vperm.slane %v127, 0
  %v135 = vunpack.c.l.b16 %v123
  %v136 = vunpack.c.l.b16 %v124
  %v137 = vunpack.c.l.b16 %v125
  %v138 = vunpack.c.l.b16 %v126
  %v139 = vpack.c.b16 %v136, %v135
  %v140 = vpack.c.b16 %v138, %v137
  %vm143 = vcmask 261120
  %v145 = vsel %vm143, %v122, 0
  %147 = vmatpush.bf16.msra.mxu0 0
  %148 = vmatpush.bf16.msra.mxu0 0
  %149 = vmatpush.bf16.msra.mxu0 0
  %150 = vmatpush.bf16.msra.mxu0 0
  %151 = vmatpush.bf16.msra.mxu0 0
  %152 = vmatpush.bf16.msra.mxu0 0
  %153 = vmatpush.bf16.msra.mxu0 %v140
  %154 = vmatpush.bf16.msra.mxu0 %v139
  %155 = vmatmul.bf16.gmra.mxu0 %v145
  %v156 = vpop.f32.mrf.mxu0
  %v157 = vadd.f32 %v129, %v156
  %v158 = vpop.f32.mrf.mxu0
  %v159 = vadd.f32 %v129, %v158
  %160 = vdwg.mxu0
  %vm161 = vcmp.gt.f32.partialorder %v157, 0.0
  %vm162 = vcmp.gt.f32.partialorder %v159, 0.0
  %v163 = vmul.f32 %v157, 0.01
  %v164 = vmul.f32 %v159, 0.01
  %v165 = vsel %vm161, %v157, %v163
  %v166 = vsel %vm162, %v159, %v164
  %v167 = vpack.c.bf16 %v166, %v165
  %v168 = vld [vmem:[%s7] sm:$0xf]
  %v169 = vld [vmem:[%s7 + $0x4] sm:$0xf]
  %v170 = vld [vmem:[#allocation2] sm:$0x1]
  %v172 = vperm.slane %v170, 0
  %v176 = vunpack.c.l.b16 %v168
  %v177 = vunpack.c.l.b16 %v169
  %v178 = vpack.c.b16 %v177, %v176
  %vm180 = vcmask 130048
  %v182 = vsel %vm180, %v167, 0
  %184 = vmatpush.bf16.msra.mxu0 0
  %185 = vmatpush.bf16.msra.mxu0 0
  %186 = vmatpush.bf16.msra.mxu0 0
  %187 = vmatpush.bf16.msra.mxu0 0
  %188 = vmatpush.bf16.msra.mxu0 0
  %189 = vmatpush.bf16.msra.mxu0 0
  %190 = vmatpush.bf16.msra.mxu0 0
  %191 = vmatpush.bf16.msra.mxu0 %v178
  %192 = vmatmul.bf16.gmra.mxu0 %v182
  %v193 = vpop.f32.mrf.mxu0
  %v194 = vadd.f32 %v172, %v193
  %v195 = vpop.f32.mrf.mxu0
  %v196 = vadd.f32 %v172, %v195
  %197 = vdwg.mxu0
  %vm198 = vcmask 7168
  %199 = vst.msk [vmem:[%s9] sm:$0xff] %vm198, %v194
  %200 = vst.msk [vmem:[%s9 + $0x8] sm:$0xff] %vm198, %v196
  // Predicated region
  $region38: #{prediction_layer_forward.1} parent=0 // pred_check
    _
  $region39: #{prediction_layer_forward.1} parent=0 // pred_check_branch
    %202 = sbr.rel (0) target = $region41
  $region40: #{prediction_layer_forward.1} parent=0 // pred_region
    _
  $region41: #{prediction_layer_forward.1} parent=0 // pred_fallthru
    _
  // Predicated region
  $region42: #{prediction_layer_forward.1} parent=0 // pred_check
    _
  $region43: #{prediction_layer_forward.1} parent=0 // pred_check_branch
    %204 = sbr.rel (0) target = $region45
  $region44: #{prediction_layer_forward.1} parent=0 // pred_region
    _
  $region45: #{prediction_layer_forward.1} parent=0 // pred_fallthru
    _

</llo_original>
